<compile_context>
chip_gen: v7x
topology: tpu7x:2x2x1
jax: 0.10.0
libtpu: 0.0.40
codegen_flags: <defaults>
</compile_context>

<pallas_src>
import functools

import jax
import jax.numpy as jnp
from jax.experimental import pallas as pl
from jax.experimental.pallas import tpu as pltpu


_MAX_TILE_N = 2048                         # cap on rows per grid step
_DEFAULT_VMEM_CAP = 64 * 1024 * 1024       # v7x per-TC capacity (conservative fallback)


def _vmem_capacity_bytes():
    try:
        return int(pltpu.get_tpu_info().vmem_capacity_bytes)
    except Exception:
        return _DEFAULT_VMEM_CAP


def _pick_tiling(n_rows, n_cls, x_bytes, t_bytes, tile_n=None):
    """Pick the largest row tile whose double-buffered footprint fits ~half VMEM."""
    vmem_cap = _vmem_capacity_bytes()
    # Per-row bytes: 2 inputs x 2 pipeline buffers + generous f32 intermediates.
    per_row = 2 * (x_bytes + t_bytes) * n_cls + 8 * n_cls * 4 + 1024
    # Sublane packing of narrow dtypes: f32 -> 8, bf16 -> 16, int8 -> 32.
    align = 8 * max(1, 4 // max(1, min(x_bytes, t_bytes)))
    if tile_n is None:
        tile_n = (vmem_cap // 2) // per_row
    tile_n = int(max(align, min(_MAX_TILE_N, (int(tile_n) // align) * align)))
    rows_aligned = ((n_rows + align - 1) // align) * align
    tile_n = min(tile_n, rows_aligned)
    vmem_limit = int(min(vmem_cap, max(2 * per_row * tile_n, 32 * 1024 * 1024)))
    return tile_n, vmem_limit


def _row_losses(x, t, softmax):
    """Per-row soft cross-entropy loss, shape (tile_n, 1), f32."""
    x = x.astype(jnp.float32)
    t = t.astype(jnp.float32)
    if softmax:
        # Stable log-softmax over the class (lane) axis without materializing
        # log_prob:  -sum(t * (x - lse)) == lse * sum(t) - sum(t * x).
        m = jnp.max(x, axis=1, keepdims=True)
        lse = jnp.log(jnp.sum(jnp.exp(x - m), axis=1, keepdims=True)) + m
        sum_t = jnp.sum(t, axis=1, keepdims=True)
        sum_tx = jnp.sum(t * x, axis=1, keepdims=True)
        return lse * sum_t - sum_tx
    else:
        # Matches torch.log(input): caller must supply strictly positive
        # probabilities, otherwise -inf/NaN (same as the PyTorch reference).
        return -jnp.sum(t * jnp.log(x), axis=1, keepdims=True)


def _reduce_kernel(x_ref, t_ref, out_ref, acc_ref, *, softmax):
    """Partial sum of per-row losses over the 'arbitrary' (j) axis."""
    j = pl.program_id(1)

    @pl.when(j == 0)
    def _():
        acc_ref[...] = jnp.zeros_like(acc_ref)

    # Vector accumulator: only a lane reduce per step; scalar reduce at the end.
    acc_ref[...] += _row_losses(x_ref[...], t_ref[...], softmax)

    @pl.when(j == pl.num_programs(1) - 1)
    def _():
        total = jnp.sum(acc_ref[...])
        out_ref[...] = jnp.full(out_ref.shape, total, dtype=out_ref.dtype)


def _rows_kernel(x_ref, t_ref, out_ref, *, softmax):
    """reduction='none': per-row losses."""
    out_ref[...] = _row_losses(x_ref[...], t_ref[...], softmax)


def soft_cross_entropy_loss(x, target, softmax=True, reduction="mean",
                            tile_n=None):
    """Pallas equivalent of SoftCrossEntropyLoss.forward for 2-D (N, C) inputs."""
    N, C = x.shape
    assert target.shape == (N, C)

    tile_n, vmem_limit = _pick_tiling(
        N, C, x.dtype.itemsize, target.dtype.itemsize, tile_n)

    n_tiles = (N + tile_n - 1) // tile_n
    n_pad = n_tiles * tile_n
    if n_pad != N:
        # Padded rows contribute exactly 0 loss:
        #   softmax=True : x=0 -> finite lse, target=0 -> loss 0
        #   softmax=False: x=1 -> log(x)=0,   target=0 -> loss 0
        pad_x = 0.0 if softmax else 1.0
        x = jnp.pad(x, ((0, n_pad - N), (0, 0)), constant_values=pad_x)
        target = jnp.pad(target, ((0, n_pad - N), (0, 0)), constant_values=0.0)

    in_specs_1d = [
        pl.BlockSpec((tile_n, C), lambda i: (i, 0)),
        pl.BlockSpec((tile_n, C), lambda i: (i, 0)),
    ]

    if reduction in ("mean", "sum"):
        # Leading "parallel" axis of partial sums so v7x's two TensorCores can
        # each stream half the rows; harmless extra outer loop on 1-TC chips.
        num_partials = 2 if (n_tiles >= 2 and n_tiles % 2 == 0) else 1
        steps = n_tiles // num_partials

        in_specs_2d = [
            pl.BlockSpec((tile_n, C), lambda i, j: (i * steps + j, 0)),
            pl.BlockSpec((tile_n, C), lambda i, j: (i * steps + j, 0)),
        ]
        kernel = functools.partial(_reduce_kernel, softmax=softmax)
        partials = pl.pallas_call(
            kernel,
            out_shape=jax.ShapeDtypeStruct((num_partials, 8, 128), jnp.float32),
            grid_spec=pltpu.PrefetchScalarGridSpec(
                num_scalar_prefetch=0,
                grid=(num_partials, steps),
                in_specs=in_specs_2d,
                out_specs=pl.BlockSpec((1, 8, 128), lambda i, j: (i, 0, 0)),
                scratch_shapes=[pltpu.VMEM((tile_n, 1), jnp.float32)],
            ),
            compiler_params=pltpu.CompilerParams(
                dimension_semantics=("parallel", "arbitrary"),
                vmem_limit_bytes=vmem_limit,
            ),
        )(x, target)
        total = jnp.sum(partials[:, 0, 0])
        if reduction == "mean":
            total = total / jnp.float32(N)   # true N, not padded N
        return total
    else:  # reduction == 'none' (or anything else -> per-row losses, as in torch)
        # TODO(synk): output is lane-width 1 (masked stores); acceptable since
        # output traffic is ~1/C of input traffic and tile_n is large.
        kernel = functools.partial(_rows_kernel, softmax=softmax)
        out = pl.pallas_call(
            kernel,
            out_shape=jax.ShapeDtypeStruct((n_pad, 1), jnp.float32),
            grid_spec=pltpu.PrefetchScalarGridSpec(
                num_scalar_prefetch=0,
                grid=(n_tiles,),
                in_specs=in_specs_1d,
                out_specs=pl.BlockSpec((tile_n, 1), lambda i: (i, 0)),
            ),
            compiler_params=pltpu.CompilerParams(
                dimension_semantics=("parallel",),
                vmem_limit_bytes=vmem_limit,
            ),
        )(x, target)
        return out[:N, 0]


def _reference(x, target, softmax=True, reduction="mean"):
    x = x.astype(jnp.float32)
    t = target.astype(jnp.float32)
    if softmax:
        log_prob = jax.nn.log_softmax(x, axis=1)
    else:
        log_prob = jnp.log(x)
    loss = -(t * log_prob).sum(axis=-1)
    if reduction == "mean":
        return loss.mean()
    elif reduction == "sum":
        return loss.sum()
    return loss


if __name__ == "__main__":
    key = jax.random.PRNGKey(0)
    k_x, k_t, k_x2, k_t2 = jax.random.split(key, 4)

    # SoftCrossEntropyLoss has no parameters; only inputs.
    # Ragged batch (13) exercises the padding path.
    N, C = 13, 128
    x = jax.random.normal(k_x, (N, C), dtype=jnp.float32)
    target = jax.nn.softmax(jax.random.normal(k_t, (N, C), dtype=jnp.float32), axis=-1)

    out_mean = soft_cross_entropy_loss(x, target, softmax=True, reduction="mean")
    out_sum = soft_cross_entropy_loss(x, target, softmax=True, reduction="sum")
    out_none = soft_cross_entropy_loss(x, target, softmax=True, reduction="none")

    # softmax=False path: inputs must be strictly positive probabilities.
    probs = jax.nn.softmax(x, axis=-1)
    out_nosm = soft_cross_entropy_loss(probs, target, softmax=False, reduction="mean")

    # bf16 ingestion (halves HBM traffic; f32 compute inside the kernel).
    x_bf = x.astype(jnp.bfloat16)
    t_bf = target.astype(jnp.bfloat16)
    out_bf16 = soft_cross_entropy_loss(x_bf, t_bf, softmax=True, reduction="mean")

    # Multi-tile + 2-partial reduction path (forced small tile for coverage).
    N2 = 160
    x2 = jax.random.normal(k_x2, (N2, C), dtype=jnp.float32)
    t2 = jax.nn.softmax(jax.random.normal(k_t2, (N2, C), dtype=jnp.float32), axis=-1)
    out_sum2 = soft_cross_entropy_loss(x2, t2, softmax=True, reduction="sum", tile_n=16)
    out_none2 = soft_cross_entropy_loss(x2, t2, softmax=True, reduction="none", tile_n=16)

    jax.block_until_ready(
        (out_mean, out_sum, out_none, out_nosm, out_bf16, out_sum2, out_none2))

    assert jnp.allclose(out_mean, _reference(x, target, True, "mean"),
                        rtol=1e-5, atol=1e-5)
    assert jnp.allclose(out_sum, _reference(x, target, True, "sum"),
                        rtol=1e-5, atol=1e-4)
    assert jnp.allclose(out_none, _reference(x, target, True, "none"),
                        rtol=1e-5, atol=1e-5)
    assert jnp.allclose(out_nosm, _reference(probs, target, False, "mean"),
                        rtol=1e-5, atol=1e-5)
    assert jnp.allclose(out_bf16, _reference(x_bf, t_bf, True, "mean"),
                        rtol=1e-4, atol=1e-4)
    assert jnp.allclose(out_sum2, _reference(x2, t2, True, "sum"),
                        rtol=1e-5, atol=1e-3)
    assert jnp.allclose(out_none2, _reference(x2, t2, True, "none"),
                        rtol=1e-5, atol=1e-5)

    print("KERNEL_OK")
</pallas_src>

<mosaic_0001>
module attributes {stable_mosaic.version = 11 : i64} {
  func.func @_reduce_kernel(%arg0: i32, %arg1: i32, %arg2: memref<16x128xf32, #tpu.memory_space<vmem>>, %arg3: memref<16x128xf32, #tpu.memory_space<vmem>>, %arg4: memref<1x8x128xf32, #tpu.memory_space<vmem>>, %arg5: memref<16x1xf32, #tpu.memory_space<vmem>>) attributes {dimension_semantics = [#tpu.dimension_semantics<parallel>, #tpu.dimension_semantics<arbitrary>], iteration_bounds = array<i64: 1, 1>, scalar_prefetch = 0 : i64, scratch_operands = 1 : i64, tpu.core_type = #tpu.core_type<tc>, window_params = [{transform_indices = @transform_0, window_bounds = array<i64: 16, 128>}, {transform_indices = @transform_1, window_bounds = array<i64: 16, 128>}, {transform_indices = @transform_2, window_bounds = array<i64: 1, 8, 128>}]} {
    %c0_i32 = arith.constant 0 : i32
    %0 = arith.cmpi eq, %arg1, %c0_i32 : i32
    %1 = arith.extui %0 : i1 to i32
    %c0_i32_0 = arith.constant 0 : i32
    %2 = arith.cmpi ne, %1, %c0_i32_0 : i32
    scf.if %2 {
      %cst_13 = arith.constant 0.000000e+00 : f32
      %27 = vector.broadcast %cst_13 : f32 to vector<16x1xf32>
      %c0_14 = arith.constant 0 : index
      %c0_15 = arith.constant 0 : index
      %28 = vector.load %arg5[%c0_14, %c0_15] : memref<16x1xf32, #tpu.memory_space<vmem>>, vector<16x1xf32>
      tpu.vector_store %arg5[%c0_14, %c0_15], %27 {strides = array<i32>} : memref<16x1xf32, #tpu.memory_space<vmem>>, vector<16x1xf32>,
    } else {
    }
    %c0 = arith.constant 0 : index
    %c0_1 = arith.constant 0 : index
    %3 = vector.load %arg5[%c0, %c0_1] : memref<16x1xf32, #tpu.memory_space<vmem>>, vector<16x1xf32>
    %c0_2 = arith.constant 0 : index
    %c0_3 = arith.constant 0 : index
    %4 = vector.load %arg2[%c0_2, %c0_3] : memref<16x128xf32, #tpu.memory_space<vmem>>, vector<16x128xf32>
    %c0_4 = arith.constant 0 : index
    %c0_5 = arith.constant 0 : index
    %5 = vector.load %arg3[%c0_4, %c0_5] : memref<16x128xf32, #tpu.memory_space<vmem>>, vector<16x128xf32>
    %cst = arith.constant dense<0xFF800000> : vector<16xf32>
    %6 = vector.multi_reduction <maximumf>, %4, %cst [1] : vector<16x128xf32> to vector<16xf32>
    %7 = vector.shape_cast %6 : vector<16xf32> to vector<16x1xf32>
    %8 = vector.broadcast %7 : vector<16x1xf32> to vector<16x128xf32>
    %9 = arith.subf %4, %8 : vector<16x128xf32>
    %10 = math.exp %9 : vector<16x128xf32>
    %cst_6 = arith.constant dense<0.000000e+00> : vector<16xf32>
    %11 = vector.multi_reduction <add>, %10, %cst_6 [1] : vector<16x128xf32> to vector<16xf32>
    %12 = vector.shape_cast %11 : vector<16xf32> to vector<16x1xf32>
    %13 = math.log %12 : vector<16x1xf32>
    %14 = arith.addf %13, %7 : vector<16x1xf32>
    %cst_7 = arith.constant dense<0.000000e+00> : vector<16xf32>
    %15 = vector.multi_reduction <add>, %5, %cst_7 [1] : vector<16x128xf32> to vector<16xf32>
    %16 = vector.shape_cast %15 : vector<16xf32> to vector<16x1xf32>
    %17 = arith.mulf %5, %4 : vector<16x128xf32>
    %cst_8 = arith.constant dense<0.000000e+00> : vector<16xf32>
    %18 = vector.multi_reduction <add>, %17, %cst_8 [1] : vector<16x128xf32> to vector<16xf32>
    %19 = vector.shape_cast %18 : vector<16xf32> to vector<16x1xf32>
    %20 = arith.mulf %14, %16 : vector<16x1xf32>
    %21 = arith.subf %20, %19 : vector<16x1xf32>
    %22 = arith.addf %3, %21 : vector<16x1xf32>
    %c0_9 = arith.constant 0 : index
    %c0_10 = arith.constant 0 : index
    %23 = vector.load %arg5[%c0_9, %c0_10] : memref<16x1xf32, #tpu.memory_space<vmem>>, vector<16x1xf32>
    tpu.vector_store %arg5[%c0_9, %c0_10], %22 {strides = array<i32>} : memref<16x1xf32, #tpu.memory_space<vmem>>, vector<16x1xf32>,
    %c0_i32_11 = arith.constant 0 : i32
    %24 = arith.cmpi eq, %arg1, %c0_i32_11 : i32
    %25 = arith.extui %24 : i1 to i32
    %c0_i32_12 = arith.constant 0 : i32
    %26 = arith.cmpi ne, %25, %c0_i32_12 : i32
    scf.if %26 {
      %c0_13 = arith.constant 0 : index
      %c0_14 = arith.constant 0 : index
      %27 = vector.load %arg5[%c0_13, %c0_14] : memref<16x1xf32, #tpu.memory_space<vmem>>, vector<16x1xf32>
      %28 = vector.shape_cast %27 : vector<16x1xf32> to vector<1x16x1xf32>
      %cst_15 = arith.constant dense<0.000000e+00> : vector<1xf32>
      %29 = vector.multi_reduction <add>, %28, %cst_15 [1, 2] : vector<1x16x1xf32> to vector<1xf32>
      %30 = vector.shape_cast %29 : vector<1xf32> to vector<1x1x1xf32>
      %31 = vector.extract %30[0, 0, 0] : f32 from vector<1x1x1xf32>
      %32 = vector.broadcast %31 : f32 to vector<1x8x128xf32>
      %c0_16 = arith.constant 0 : index
      %c0_17 = arith.constant 0 : index
      %c0_18 = arith.constant 0 : index
      %33 = vector.load %arg4[%c0_16, %c0_17, %c0_18] : memref<1x8x128xf32, #tpu.memory_space<vmem>>, vector<1x8x128xf32>
      tpu.vector_store %arg4[%c0_16, %c0_17, %c0_18], %32 {strides = array<i32>} : memref<1x8x128xf32, #tpu.memory_space<vmem>>, vector<1x8x128xf32>,
    } else {
    }
    return
  }
  func.func @transform_0(%arg0: i32, %arg1: i32) -> (i32, i32) {
    %c1_i32 = arith.constant 1 : i32
    %0 = arith.muli %arg0, %c1_i32 : i32
    %1 = arith.addi %0, %arg1 : i32
    %c0_i32 = arith.constant 0 : i32
    %c0_i32_0 = arith.constant 0 : i32
    return %1, %c0_i32 : i32, i32
  }
  func.func @transform_1(%arg0: i32, %arg1: i32) -> (i32, i32) {
    %c1_i32 = arith.constant 1 : i32
    %0 = arith.muli %arg0, %c1_i32 : i32
    %1 = arith.addi %0, %arg1 : i32
    %c0_i32 = arith.constant 0 : i32
    %c0_i32_0 = arith.constant 0 : i32
    return %1, %c0_i32 : i32, i32
  }
  func.func @transform_2(%arg0: i32, %arg1: i32) -> (i32, i32, i32) {
    %c0_i32 = arith.constant 0 : i32
    %c0_i32_0 = arith.constant 0 : i32
    %c0_i32_1 = arith.constant 0 : i32
    return %arg0, %c0_i32, %c0_i32_0 : i32, i32, i32
  }
}

</mosaic_0001>

<llo_original>
// kernel: tpu_custom_call.1
$region0: #{tpu_custom_call.1}
  #allocation0 [shape = 'u32[]', space=smem, size = 0x4, offset = 0x4, fixed_abs, tag = 'smem constant byte address 0x4 - core index']
  #allocation1 [shape = 'u32[144,128]{1,0:T(1,128)}', space=vmem, size = 0x12000, scoped, tag = 'internal scratch']
  #allocation2 [shape = 'f32[16,1]{1,0:T(8,128)}', space=vmem, size = 0x2000, scoped, tag = 'scratch operand']
  %s0 = inlined_call_operand.hbm [shape: f32[16,128], index: 0, kind: input, shape index: {}]
  %s1 = inlined_call_operand.hbm [shape: f32[16,128], index: 1, kind: input, shape index: {}]
  %s2 = inlined_call_operand.hbm [shape: f32[1,8,128], index: 2, kind: output, shape index: {}]
  %s3 = sld [smem:[#allocation0]]
  $region34: #{tpu_custom_call.1} parent=0
    _
  %s5 = ssub.s32 1, %s3
  %s6 = scalar_select 0, %s5, %s3
  $region1: #{tpu_custom_call.1} parent=0
    #allocation3 [shape = 'u8[8192]{0}', space=vmem, size = 0x2000, scoped, tag = 'input window, operand 0, single buffered']
    #allocation4 [shape = 's32[1]{0}', space=sflag, size = 0x4, scoped, tag = 'scoped memory for tpu_custom_call.1']
    #allocation5 [shape = 's32[1]{0}', space=sflag, size = 0x4, scoped, tag = 'scoped memory for tpu_custom_call.1']
    #allocation6 [shape = 'u8[8192]{0}', space=vmem, size = 0x2000, scoped, tag = 'input window, operand 1, single buffered']
    #allocation7 [shape = 's32[1]{0}', space=sflag, size = 0x4, scoped, tag = 'scoped memory for tpu_custom_call.1']
    #allocation8 [shape = 'u8[4096]{0}', space=vmem, size = 0x1000, scoped, tag = 'output window, operand 0, single buffered']
    %7 = vsyncpa [#allocation4], 0
    %8 = vsyncpa [#allocation7], 0
    %9 = vsyncpa [#allocation5], 0
    // Predicated region
    $region2: #{tpu_custom_call.1} parent=1 // pred_check
      _
    $region3: #{tpu_custom_call.1} parent=1 // pred_check_branch
      %11 = sbr.rel (0) target = $region5
    $region4: #{tpu_custom_call.1} parent=1 // pred_region
      %s12 = sadd.s32 0, 0
      %s13 = smul.u32 2, %s12
      %s15 = ssub.s32 256, 256
      %16 = vsyncadd [#allocation4], %s15
      %s17 = smul.addr %s13, 128
      %s18 = scalar_lea.hbm %s0, %s17
      %s19 = sshll.u32 [#allocation3], 4
      %s20 = int_to_ptr.vmem [resolvable:$true] %s19
      %25 = dma.hbm_to_vmem [thread:$0]  %s18, 256, %s20, [#allocation4], 128, 128, 8
    $region5: #{tpu_custom_call.1} parent=1 // pred_fallthru
      _
    // Predicated region
    $region6: #{tpu_custom_call.1} parent=1 // pred_check
      _
    $region7: #{tpu_custom_call.1} parent=1 // pred_check_branch
      %27 = sbr.rel (0) target = $region9
    $region8: #{tpu_custom_call.1} parent=1 // pred_region
      %s28 = sadd.s32 0, 0
      %s29 = smul.u32 2, %s28
      %s31 = ssub.s32 256, 256
      %32 = vsyncadd [#allocation7], %s31
      %s33 = smul.addr %s29, 128
      %s34 = scalar_lea.hbm %s1, %s33
      %s35 = sshll.u32 [#allocation6], 4
      %s36 = int_to_ptr.vmem [resolvable:$true] %s35
      %41 = dma.hbm_to_vmem [thread:$0]  %s34, 256, %s36, [#allocation7], 128, 128, 8
    $region9: #{tpu_custom_call.1} parent=1 // pred_fallthru
      _
    // Predicated region
    $region10: #{tpu_custom_call.1} parent=1 // pred_check
      _
    $region11: #{tpu_custom_call.1} parent=1 // pred_check_branch
      %43 = sbr.rel (0) target = $region13
    $region12: #{tpu_custom_call.1} parent=1 // pred_region
      %44 = dma.done [#allocation4], 256
    $region13: #{tpu_custom_call.1} parent=1 // pred_fallthru
      _
    // Predicated region
    $region14: #{tpu_custom_call.1} parent=1 // pred_check
      _
    $region15: #{tpu_custom_call.1} parent=1 // pred_check_branch
      %46 = sbr.rel (0) target = $region17
    $region16: #{tpu_custom_call.1} parent=1 // pred_region
      %47 = dma.done [#allocation7], 256
    $region17: #{tpu_custom_call.1} parent=1 // pred_fallthru
      _
    %s48 = sadd.s32 0, 0
    %s49 = smul.u32 2, %s48
    %s50 = sadd.s32 0, 0
    %s51 = smul.u32 2, %s50
    %p52 = scmp.eq.s32.totalorder 0, 0
    // Predicated region
    $region18: #{tpu_custom_call.1} parent=1 // pred_check
      %p53 = pneg %p52
    $region19: #{tpu_custom_call.1} parent=1 // pred_check_branch
      %55 = sbr.rel (%p53) target = $region21
    $region20: #{tpu_custom_call.1} parent=1 // pred_region
      %vm56 = vcmask 7168
      %57 = vst.msk [vmem:[#allocation2] sm:$0xff] %vm56, 0.0
      %58 = vst.msk [vmem:[#allocation2 + $0x8] sm:$0xff] %vm56, 0.0
    $region21: #{tpu_custom_call.1} parent=1 // pred_fallthru
      _
    %v59 = vld [vmem:[#allocation2] sm:$0xff]
    %v60 = vld [vmem:[#allocation2 + $0x8] sm:$0xff]
    %v61 = vld [vmem:[#allocation3] sm:$0xff]
    %v62 = vld [vmem:[#allocation3 + $0x8] sm:$0xff]
    %v63 = vld [vmem:[#allocation6] sm:$0xff]
    %v64 = vld [vmem:[#allocation6 + $0x8] sm:$0xff]
    %65 = vmax.xlane.f32.xlu0 %v61
    %v66 = vpop.xlane.xlu0 %65
    %67 = vmax.xlane.f32.xlu0 %v62
    %v68 = vpop.xlane.xlu0 %67
    %v69 = vsub.f32 %v61, %v66
    %v70 = vsub.f32 %v62, %v68
    %v71 = vmul.f32 %v69, 1.442695
    %v72 = vpow.pop %v71
    %v73 = vmul.f32 %v70, 1.442695
    %v74 = vpow.pop %v73
    %75 = vadd.xlane.f32.xlu0 %v72
    %v76 = vpop.xlane.xlu0 %75
    %77 = vadd.xlane.f32.xlu0 %v74
    %v78 = vpop.xlane.xlu0 %77
    %v79 = vlog2.pop %v76
    %v80 = vmul.f32 %v79, 0.6931472
    %v81 = vlog2.pop %v78
    %v82 = vmul.f32 %v81, 0.6931472
    %v83 = vadd.f32 %v80, %v66
    %v84 = vadd.f32 %v82, %v68
    %85 = vadd.xlane.f32.xlu0 %v63
    %v86 = vpop.xlane.xlu0 %85
    %87 = vadd.xlane.f32.xlu0 %v64
    %v88 = vpop.xlane.xlu0 %87
    %v89 = vmul.f32 %v63, %v61
    %v90 = vmul.f32 %v64, %v62
    %91 = vadd.xlane.f32.xlu0 %v89
    %v92 = vpop.xlane.xlu0 %91
    %93 = vadd.xlane.f32.xlu0 %v90
    %v94 = vpop.xlane.xlu0 %93
    %v95 = vmul.f32 %v83, %v86
    %v96 = vmul.f32 %v84, %v88
    %v97 = vsub.f32 %v95, %v92
    %v98 = vsub.f32 %v96, %v94
    %v99 = vadd.f32 %v59, %v97
    %v100 = vadd.f32 %v60, %v98
    %vm101 = vcmask 7168
    %102 = vst.msk [vmem:[#allocation2] sm:$0xff] %vm101, %v99
    %103 = vst.msk [vmem:[#allocation2 + $0x8] sm:$0xff] %vm101, %v100
    // Predicated region
    $region22: #{tpu_custom_call.1} parent=1 // pred_check
      %p104 = pneg %p52
    $region23: #{tpu_custom_call.1} parent=1 // pred_check_branch
      %106 = sbr.rel (%p104) target = $region25
    $region24: #{tpu_custom_call.1} parent=1 // pred_region
      %v107 = vld [vmem:[#allocation2] sm:$0xff]
      %v108 = vld [vmem:[#allocation2 + $0x8] sm:$0xff]
      %v109 = vsel %vm101, %v107, 0.0
      %v110 = vsel %vm101, %v108, 0.0
      %v111 = vadd.f32 %v109, %v110
      %112 = vadd.xlane.f32.xlu0 %v111
      %v113 = vpop.xlane.xlu0 %112
      %v114 = vrot.slane %v113, 4
      %v115 = vadd.f32 %v113, %v114
      %v116 = vrot.slane %v115, 2
      %v117 = vadd.f32 %v115, %v116
      %v118 = vrot.slane %v117, 1
      %v119 = vadd.f32 %v117, %v118
      %s120 = vtos %v119
      %v121 = vstv %s120
      %122 = vst [vmem:[#allocation8] sm:$0xff] %v121
    $region25: #{tpu_custom_call.1} parent=1 // pred_fallthru
      _
    // Predicated region
    $region26: #{tpu_custom_call.1} parent=1 // pred_check
      _
    $region27: #{tpu_custom_call.1} parent=1 // pred_check_branch
      %124 = sbr.rel (0) target = $region29
    $region28: #{tpu_custom_call.1} parent=1 // pred_region
      %s126 = ssub.s32 128, 128
      %127 = vsyncadd [#allocation5], %s126
      %s129 = sshll.u32 [#allocation8], 4
      %s130 = int_to_ptr.vmem [resolvable:$true] %s129
      %132 = dma.vmem_to_hbm [thread:$0]  %s130, 128, %s2, [#allocation5]
    $region29: #{tpu_custom_call.1} parent=1 // pred_fallthru
      _
    // Predicated region
    $region30: #{tpu_custom_call.1} parent=1 // pred_check
      _
    $region31: #{tpu_custom_call.1} parent=1 // pred_check_branch
      %134 = sbr.rel (0) target = $region33
    $region32: #{tpu_custom_call.1} parent=1 // pred_region
      %135 = dma.done [#allocation5], 128
    $region33: #{tpu_custom_call.1} parent=1 // pred_fallthru
      _
    %136 = vsyncpa [#allocation4], 1
    %137 = vsyncpa [#allocation7], 1
    %138 = vsyncpa [#allocation5], 1

</llo_original>
